<compile_context>
chip_gen: v7x
topology: tpu7x:2x2x1
jax: 0.10.0
libtpu: 0.0.40
codegen_flags: <defaults>
</compile_context>

<pallas_src>
import jax
import jax.numpy as jnp
from jax.experimental import pallas as pl
from jax.experimental.pallas import tpu as pltpu

IN_FEATURES = 561
HIDDEN = 50


def _round_up(n: int, m: int) -> int:
    return ((n + m - 1) // m) * m


def _default_batch_tile() -> int:
    """Per-generation batch tile that fits the default scoped-VMEM limit with f32 x."""
    try:
        kind = jax.devices()[0].device_kind.lower()
    except Exception:
        return 2048
    if "v6" in kind or "v7" in kind:
        # 32 MiB scoped default: f32 x tile 4096*561*4 ~= 9.2 MB x 2 buffers fits.
        return 4096
    # v5e (16 MiB scoped default) and unknown chips: 2048*561*4 ~= 4.6 MB x 2 fits.
    return 2048


def _pick_batch_tile(B: int, max_tile: int) -> int:
    if B <= max_tile:
        return B  # block == full dim is always legal
    # Keep tiles large but aim for >=4 grid steps (v7x megacore + pipeline overlap).
    return min(max_tile, max(8, _round_up(pl.cdiv(B, 4), 8)))


def har_kernel(x_ref, w1_ref, b1_ref, w2_ref, b2_ref, out_ref):
    # x_ref: [TB, 561] f32 (streamed), w1 bf16, b1/w2/b2 f32; out_ref: [TB, C] f32.
    # Cast to bf16 on-chip only for the MXU input of the dominant matmul.
    x = x_ref[...].astype(jnp.bfloat16)

    # fc1 (+bias, ReLU) — bf16 MXU inputs, f32 accumulation.
    h = jnp.dot(x, w1_ref[...], preferred_element_type=jnp.float32)
    h = jnp.maximum(h + b1_ref[...], 0.0)

    # fc4 — tiny (K=50, N=C): run it in f32, no extra activation rounding.
    logits = jnp.dot(h, w2_ref[...], preferred_element_type=jnp.float32)
    logits = logits + b2_ref[...]

    # Numerically-stable log_softmax over the class axis (strictly per-row, so
    # padded rows of a partial batch tile cannot affect valid rows; their stores
    # are masked). exp/log go to the EUP, row max/sum to the XLU — both idle
    # while DMA/MXU dominate.
    m = jnp.max(logits, axis=1, keepdims=True)
    shifted = logits - m
    lse = jnp.log(jnp.sum(jnp.exp(shifted), axis=1, keepdims=True))
    out_ref[...] = (shifted - lse).astype(out_ref.dtype)


def har_model_forward(x, w1, b1, w2, b2, *, batch_tile=None):
    """x: [B, 561] f32; w1: [561, 50]; b1: [50] or [1,50]; w2: [50, C]; b2: [C] or [1,C]."""
    B = x.shape[0]
    num_classes = w2.shape[1]

    max_tile = _default_batch_tile() if batch_tile is None else batch_tile
    tb = _pick_batch_tile(B, max_tile)
    grid = (pl.cdiv(B, tb),)

    x_f = jnp.asarray(x, jnp.float32)                      # streamed as-is; cast on-chip
    w1_c = jnp.asarray(w1, jnp.bfloat16)                   # bf16 MXU weight (DMA'd once)
    w2_f = jnp.asarray(w2, jnp.float32)                    # tiny; keep f32 for parity
    b1_f = jnp.asarray(b1, jnp.float32).reshape(1, HIDDEN)
    b2_f = jnp.asarray(b2, jnp.float32).reshape(1, num_classes)

    cost = pl.CostEstimate(
        flops=2 * B * IN_FEATURES * HIDDEN + 2 * B * HIDDEN * num_classes,
        transcendentals=B * (num_classes + 1),
        bytes_accessed=(B * IN_FEATURES * 4
                        + IN_FEATURES * HIDDEN * 2
                        + HIDDEN * 4
                        + HIDDEN * num_classes * 4
                        + num_classes * 4
                        + B * num_classes * 4),
    )

    return pl.pallas_call(
        har_kernel,
        out_shape=jax.ShapeDtypeStruct((B, num_classes), jnp.float32),
        grid=grid,
        in_specs=[
            # x: tiled over batch, double-buffered by the Pallas pipeline.
            pl.BlockSpec((tb, IN_FEATURES), lambda i: (i, 0)),
            # Weights/biases: constant index_map -> DMA'd once, VMEM-resident.
            pl.BlockSpec((IN_FEATURES, HIDDEN), lambda i: (0, 0)),
            pl.BlockSpec((1, HIDDEN), lambda i: (0, 0)),
            pl.BlockSpec((HIDDEN, num_classes), lambda i: (0, 0)),
            pl.BlockSpec((1, num_classes), lambda i: (0, 0)),
        ],
        out_specs=pl.BlockSpec((tb, num_classes), lambda i: (i, 0)),
        compiler_params=pltpu.CompilerParams(
            # Batch tiles are independent -> parallel (megacore sharding on v7x).
            dimension_semantics=("parallel",)
        ),
        cost_estimate=cost,
    )(x_f, w1_c, b1_f, w2_f, b2_f)


def init_params(key, num_classes):
    # Deterministic synthetic init (PyTorch Linear-style uniform bounds),
    # stored as [in_features, out_features] so the kernel computes x @ W + b.
    k1, k2, k3, k4 = jax.random.split(key, 4)
    bound1 = 1.0 / (IN_FEATURES ** 0.5)
    bound2 = 1.0 / (HIDDEN ** 0.5)
    w1 = jax.random.uniform(k1, (IN_FEATURES, HIDDEN), jnp.float32, -bound1, bound1)
    b1 = jax.random.uniform(k2, (1, HIDDEN), jnp.float32, -bound1, bound1)
    w2 = jax.random.uniform(k3, (HIDDEN, num_classes), jnp.float32, -bound2, bound2)
    b2 = jax.random.uniform(k4, (1, num_classes), jnp.float32, -bound2, bound2)
    return w1, b1, w2, b2


if __name__ == "__main__":
    num_classes = 6
    batch = 100            # small demo batch; with batch_tile=32 this exercises
                           # multiple grid steps plus a partial (masked) last tile.

    key = jax.random.PRNGKey(0)
    kx, kp = jax.random.split(key)
    x = jax.random.normal(kx, (batch, IN_FEATURES), jnp.float32)
    w1, b1, w2, b2 = init_params(kp, num_classes)

    out = har_model_forward(x, w1, b1, w2, b2, batch_tile=32)
    out = jax.block_until_ready(out)

    # Reference with the same rounding model: bf16 x and W1 (f32 accumulation),
    # everything else in f32.
    xb = x.astype(jnp.bfloat16).astype(jnp.float32)
    w1b = w1.astype(jnp.bfloat16).astype(jnp.float32)
    h_ref = jnp.maximum(xb @ w1b + b1, 0.0)
    logits_ref = h_ref @ w2 + b2
    ref = jax.nn.log_softmax(logits_ref, axis=1)

    assert out.shape == (batch, num_classes)
    assert bool(jnp.all(jnp.isfinite(out)))
    assert jnp.allclose(out, ref, atol=2e-3, rtol=1e-3), (
        float(jnp.max(jnp.abs(out - ref))))

    # Looser check against the pure-f32 reference (bf16 rounding of x/W1 only).
    h32 = jnp.maximum(x @ w1 + b1, 0.0)
    ref32 = jax.nn.log_softmax(h32 @ w2 + b2, axis=1)
    assert jnp.allclose(out, ref32, atol=5e-2, rtol=5e-2)

    # Also exercise the single-tile path (whole batch in one block).
    out_single = jax.block_until_ready(har_model_forward(x, w1, b1, w2, b2))
    assert jnp.allclose(out_single, ref, atol=2e-3, rtol=1e-3)

    print("KERNEL_OK")
</pallas_src>

<mosaic_0001>
module attributes {stable_mosaic.version = 11 : i64} {
  func.func @har_kernel(%arg0: i32, %arg1: memref<32x561xf32, #tpu.memory_space<vmem>>, %arg2: memref<561x50xbf16, #tpu.memory_space<vmem>>, %arg3: memref<1x50xf32, #tpu.memory_space<vmem>>, %arg4: memref<50x6xf32, #tpu.memory_space<vmem>>, %arg5: memref<1x6xf32, #tpu.memory_space<vmem>>, %arg6: memref<32x6xf32, #tpu.memory_space<vmem>>) attributes {dimension_semantics = [#tpu.dimension_semantics<parallel>], iteration_bounds = array<i64: 4>, scalar_prefetch = 0 : i64, scratch_operands = 0 : i64, tpu.core_type = #tpu.core_type<tc>, window_params = [{transform_indices = @transform_0, window_bounds = array<i64: 32, 561>}, {pipeline_mode = #tpu.pipeline_mode<synchronous>, transform_indices = @transform_1, window_bounds = array<i64: 561, 50>}, {pipeline_mode = #tpu.pipeline_mode<synchronous>, transform_indices = @transform_2, window_bounds = array<i64: 1, 50>}, {pipeline_mode = #tpu.pipeline_mode<synchronous>, transform_indices = @transform_3, window_bounds = array<i64: 50, 6>}, {pipeline_mode = #tpu.pipeline_mode<synchronous>, transform_indices = @transform_4, window_bounds = array<i64: 1, 6>}, {transform_indices = @transform_5, window_bounds = array<i64: 32, 6>}]} {
    %c0 = arith.constant 0 : index
    %c0_0 = arith.constant 0 : index
    %0 = vector.load %arg1[%c0, %c0_0] : memref<32x561xf32, #tpu.memory_space<vmem>>, vector<32x561xf32>
    %1 = arith.truncf %0 : vector<32x561xf32> to vector<32x561xbf16>
    %c0_1 = arith.constant 0 : index
    %c0_2 = arith.constant 0 : index
    %2 = vector.load %arg2[%c0_1, %c0_2] : memref<561x50xbf16, #tpu.memory_space<vmem>>, vector<561x50xbf16>
    %cst = arith.constant dense<0.000000e+00> : vector<32x50xf32>
    %3 = tpu.matmul %1, %2, %cst {dimension_numbers = #tpu.dot_dimension_numbers<[1], [0], [0], [1], [0, 0, 1, 1], [], []>} : vector<32x561xbf16>, vector<561x50xbf16>, vector<32x50xf32> -> vector<32x50xf32>
    %c0_3 = arith.constant 0 : index
    %c0_4 = arith.constant 0 : index
    %4 = vector.load %arg3[%c0_3, %c0_4] : memref<1x50xf32, #tpu.memory_space<vmem>>, vector<1x50xf32>
    %5 = vector.broadcast %4 : vector<1x50xf32> to vector<32x50xf32>
    %6 = arith.addf %3, %5 : vector<32x50xf32>
    %cst_5 = arith.constant 0.000000e+00 : f32
    %7 = vector.broadcast %cst_5 : f32 to vector<32x50xf32>
    %8 = arith.maximumf %6, %7 : vector<32x50xf32>
    %c0_6 = arith.constant 0 : index
    %c0_7 = arith.constant 0 : index
    %9 = vector.load %arg4[%c0_6, %c0_7] : memref<50x6xf32, #tpu.memory_space<vmem>>, vector<50x6xf32>
    %cst_8 = arith.constant dense<0.000000e+00> : vector<32x6xf32>
    %10 = tpu.matmul %8, %9, %cst_8 {dimension_numbers = #tpu.dot_dimension_numbers<[1], [0], [0], [1], [0, 0, 1, 1], [], []>} : vector<32x50xf32>, vector<50x6xf32>, vector<32x6xf32> -> vector<32x6xf32>
    %c0_9 = arith.constant 0 : index
    %c0_10 = arith.constant 0 : index
    %11 = vector.load %arg5[%c0_9, %c0_10] : memref<1x6xf32, #tpu.memory_space<vmem>>, vector<1x6xf32>
    %12 = vector.broadcast %11 : vector<1x6xf32> to vector<32x6xf32>
    %13 = arith.addf %10, %12 : vector<32x6xf32>
    %cst_11 = arith.constant dense<0xFF800000> : vector<32xf32>
    %14 = vector.multi_reduction <maximumf>, %13, %cst_11 [1] : vector<32x6xf32> to vector<32xf32>
    %15 = vector.shape_cast %14 : vector<32xf32> to vector<32x1xf32>
    %16 = vector.broadcast %15 : vector<32x1xf32> to vector<32x6xf32>
    %17 = arith.subf %13, %16 : vector<32x6xf32>
    %18 = math.exp %17 : vector<32x6xf32>
    %cst_12 = arith.constant dense<0.000000e+00> : vector<32xf32>
    %19 = vector.multi_reduction <add>, %18, %cst_12 [1] : vector<32x6xf32> to vector<32xf32>
    %20 = vector.shape_cast %19 : vector<32xf32> to vector<32x1xf32>
    %21 = math.log %20 : vector<32x1xf32>
    %22 = vector.broadcast %21 : vector<32x1xf32> to vector<32x6xf32>
    %23 = arith.subf %17, %22 : vector<32x6xf32>
    %c0_13 = arith.constant 0 : index
    %c0_14 = arith.constant 0 : index
    %24 = vector.load %arg6[%c0_13, %c0_14] : memref<32x6xf32, #tpu.memory_space<vmem>>, vector<32x6xf32>
    tpu.vector_store %arg6[%c0_13, %c0_14], %23 {strides = array<i32>} : memref<32x6xf32, #tpu.memory_space<vmem>>, vector<32x6xf32>,
    return
  }
  func.func @transform_0(%arg0: i32) -> (i32, i32) {
    %c0_i32 = arith.constant 0 : i32
    %c0_i32_0 = arith.constant 0 : i32
    return %arg0, %c0_i32 : i32, i32
  }
  func.func @transform_1(%arg0: i32) -> (i32, i32) {
    %c0_i32 = arith.constant 0 : i32
    %c0_i32_0 = arith.constant 0 : i32
    %c0_i32_1 = arith.constant 0 : i32
    return %c0_i32, %c0_i32_0 : i32, i32
  }
  func.func @transform_2(%arg0: i32) -> (i32, i32) {
    %c0_i32 = arith.constant 0 : i32
    %c0_i32_0 = arith.constant 0 : i32
    %c0_i32_1 = arith.constant 0 : i32
    return %c0_i32, %c0_i32_0 : i32, i32
  }
  func.func @transform_3(%arg0: i32) -> (i32, i32) {
    %c0_i32 = arith.constant 0 : i32
    %c0_i32_0 = arith.constant 0 : i32
    %c0_i32_1 = arith.constant 0 : i32
    return %c0_i32, %c0_i32_0 : i32, i32
  }
  func.func @transform_4(%arg0: i32) -> (i32, i32) {
    %c0_i32 = arith.constant 0 : i32
    %c0_i32_0 = arith.constant 0 : i32
    %c0_i32_1 = arith.constant 0 : i32
    return %c0_i32, %c0_i32_0 : i32, i32
  }
  func.func @transform_5(%arg0: i32) -> (i32, i32) {
    %c0_i32 = arith.constant 0 : i32
    %c0_i32_0 = arith.constant 0 : i32
    return %arg0, %c0_i32 : i32, i32
  }
}

</mosaic_0001>

<llo_original>
// kernel: tpu_custom_call.1
$region0: #{tpu_custom_call.1}
  #allocation0 [shape = 'u32[]', space=smem, size = 0x4, offset = 0x4, fixed_abs, tag = 'smem constant byte address 0x4 - core index']
  #allocation1 [shape = 'u32[144,128]{1,0:T(1,128)}', space=vmem, size = 0x12000, scoped, tag = 'internal scratch']
  %s0 = inlined_call_operand.hbm [shape: f32[100,561], index: 0, kind: input, shape index: {}]
  %s1 = inlined_call_operand.vmem [shape: bf16[561,50], index: 1, kind: input, shape index: {}]
  %s2 = inlined_call_operand.vmem [shape: f32[1,50], index: 2, kind: input, shape index: {}]
  %s3 = inlined_call_operand.vmem [shape: f32[50,6], index: 3, kind: input, shape index: {}]
  %s4 = inlined_call_operand.vmem [shape: f32[1,6], index: 4, kind: input, shape index: {}]
  %s5 = inlined_call_operand.vmem [shape: f32[100,6], index: 5, kind: output, shape index: {}]
  %s6 = sld [smem:[#allocation0]]
  $region105: #{tpu_custom_call.1} parent=0
    _
  %s8 = ssub.s32 1, %s6
  %s9 = scalar_select 0, %s8, %s6
  $region1: #{tpu_custom_call.1} parent=0
    #allocation2 [shape = 'u8[163840]{0}', space=vmem, size = 0x28000, scoped, tag = 'input window, operand 0']
    #allocation3 [shape = 's32[2]{0}', space=sflag, size = 0x8, scoped, tag = 'scoped memory for tpu_custom_call.1']
    #allocation4 [shape = 'u8[32768]{0}', space=vmem, size = 0x8000, scoped, tag = 'output window, operand 0']
    %10 = vsyncpa [#allocation3], 0
    %s11 = scalar_lea.sflag [#allocation3], 1
    %12 = vsyncpa %s11, 0
    loop: start=0, step=1, limit=6
    $region2: #{tpu_custom_call.1} parent=1 // loop_pre_header
      _
    $region3: #{tpu_custom_call.1} parent=1 // loop_header
      %s14 = sphi 0, %s18
      %p15 = scmp.ge.s32.totalorder %s14, 6
      %s24 = sphi 0, %s26
      %s27 = sphi 0, %s24
      %s28 = sphi 0, %s27
      %s44 = sphi 0, %s28
      %s48 = sphi 0, %s48
      %s50 = sphi 0, %s48
      %s51 = sphi 0, %s50
      %s65 = sphi 0, %s51
      %s69 = sphi 0, %s69
      %s71 = sphi 0, %s69
      %s72 = sphi 0, %s71
      %s86 = sphi 0, %s72
      %s90 = sphi 0, %s90
      %s92 = sphi 0, %s90
      %s93 = sphi 0, %s92
      %s107 = sphi 0, %s93
      %s111 = sphi 0, %s111
      %s113 = sphi 0, %s111
      %s114 = sphi 0, %s113
      %s128 = sphi 0, %s114
      %s134 = sphi 0, %s136
      %s137 = sphi 0, %s134
      %s138 = sphi 0, %s137
      %s154 = sphi 0, %s138
    $region4: #{tpu_custom_call.1} parent=1 // loop_header_branch
      %17 = sbr.rel (%p15) target = $region8
    $region5: #{tpu_custom_call.1} parent=1 // loop_body
      %s19 = ssub.s32 %s14, 1
      %s20 = ssub.s32 %s14, 2
      %s21 = sadd.s32 %s14, 1
      %s22 = ssub.s32 %s14, %s21
      %p23 = scmp.eq.s32.totalorder %s22, 0
      %s25 = sadd.s32 %s24, 1
      %s26 = scalar_select %p23, %s24, %s25
      %p29 = pneg %p23
      %p30 = scmp.eq.s32.totalorder %s14, 3
      %p31 = por %p29, %p30
      %p32 = scmp.ne.s32.totalorder %s24, %s27
      %p33 = scmp.eq.s32.totalorder %s14, 0
      %p34 = por %p32, %p33
      %p35 = scmp.ne.s32.totalorder %s24, %s27
      %p36 = scmp.eq.s32.totalorder %s19, 3
      %p37 = por %p35, %p36
      %p38 = scmp.ne.s32.totalorder %s27, %s28
      %p39 = scmp.eq.s32.totalorder %s19, 0
      %p40 = por %p38, %p39
      %p41 = scmp.ne.s32.totalorder %s27, %s28
      %p42 = scmp.eq.s32.totalorder %s20, 3
      %p43 = por %p41, %p42
      %p45 = scmp.ne.s32.totalorder %s28, %s44
      %p46 = scmp.eq.s32.totalorder %s20, 0
      %p47 = por %p45, %p46
      %s49 = sadd.s32 %s48, 1
      %p52 = scmp.eq.s32.totalorder %s14, 3
      %p53 = scmp.ne.s32.totalorder %s48, %s50
      %p54 = scmp.eq.s32.totalorder %s14, 0
      %p55 = por %p53, %p54
      %p56 = scmp.ne.s32.totalorder %s48, %s50
      %p57 = scmp.eq.s32.totalorder %s19, 3
      %p58 = por %p56, %p57
      %p59 = scmp.ne.s32.totalorder %s50, %s51
      %p60 = scmp.eq.s32.totalorder %s19, 0
      %p61 = por %p59, %p60
      %p62 = scmp.ne.s32.totalorder %s50, %s51
      %p63 = scmp.eq.s32.totalorder %s20, 3
      %p64 = por %p62, %p63
      %p66 = scmp.ne.s32.totalorder %s51, %s65
      %p67 = scmp.eq.s32.totalorder %s20, 0
      %p68 = por %p66, %p67
      %s70 = sadd.s32 %s69, 1
      %p73 = scmp.eq.s32.totalorder %s14, 3
      %p74 = scmp.ne.s32.totalorder %s69, %s71
      %p75 = scmp.eq.s32.totalorder %s14, 0
      %p76 = por %p74, %p75
      %p77 = scmp.ne.s32.totalorder %s69, %s71
      %p78 = scmp.eq.s32.totalorder %s19, 3
      %p79 = por %p77, %p78
      %p80 = scmp.ne.s32.totalorder %s71, %s72
      %p81 = scmp.eq.s32.totalorder %s19, 0
      %p82 = por %p80, %p81
      %p83 = scmp.ne.s32.totalorder %s71, %s72
      %p84 = scmp.eq.s32.totalorder %s20, 3
      %p85 = por %p83, %p84
      %p87 = scmp.ne.s32.totalorder %s72, %s86
      %p88 = scmp.eq.s32.totalorder %s20, 0
      %p89 = por %p87, %p88
      %s91 = sadd.s32 %s90, 1
      %p94 = scmp.eq.s32.totalorder %s14, 3
      %p95 = scmp.ne.s32.totalorder %s90, %s92
      %p96 = scmp.eq.s32.totalorder %s14, 0
      %p97 = por %p95, %p96
      %p98 = scmp.ne.s32.totalorder %s90, %s92
      %p99 = scmp.eq.s32.totalorder %s19, 3
      %p100 = por %p98, %p99
      %p101 = scmp.ne.s32.totalorder %s92, %s93
      %p102 = scmp.eq.s32.totalorder %s19, 0
      %p103 = por %p101, %p102
      %p104 = scmp.ne.s32.totalorder %s92, %s93
      %p105 = scmp.eq.s32.totalorder %s20, 3
      %p106 = por %p104, %p105
      %p108 = scmp.ne.s32.totalorder %s93, %s107
      %p109 = scmp.eq.s32.totalorder %s20, 0
      %p110 = por %p108, %p109
      %s112 = sadd.s32 %s111, 1
      %p115 = scmp.eq.s32.totalorder %s14, 3
      %p116 = scmp.ne.s32.totalorder %s111, %s113
      %p117 = scmp.eq.s32.totalorder %s14, 0
      %p118 = por %p116, %p117
      %p119 = scmp.ne.s32.totalorder %s111, %s113
      %p120 = scmp.eq.s32.totalorder %s19, 3
      %p121 = por %p119, %p120
      %p122 = scmp.ne.s32.totalorder %s113, %s114
      %p123 = scmp.eq.s32.totalorder %s19, 0
      %p124 = por %p122, %p123
      %p125 = scmp.ne.s32.totalorder %s113, %s114
      %p126 = scmp.eq.s32.totalorder %s20, 3
      %p127 = por %p125, %p126
      %p129 = scmp.ne.s32.totalorder %s114, %s128
      %p130 = scmp.eq.s32.totalorder %s20, 0
      %p131 = por %p129, %p130
      %s132 = ssub.s32 %s14, %s21
      %p133 = scmp.eq.s32.totalorder %s132, 0
      %s135 = sadd.s32 %s134, 1
      %s136 = scalar_select %p133, %s134, %s135
      %p139 = pneg %p133
      %p140 = scmp.eq.s32.totalorder %s14, 3
      %p141 = por %p139, %p140
      %p142 = scmp.ne.s32.totalorder %s134, %s137
      %p143 = scmp.eq.s32.totalorder %s14, 0
      %p144 = por %p142, %p143
      %p145 = scmp.ne.s32.totalorder %s134, %s137
      %p146 = scmp.eq.s32.totalorder %s19, 3
      %p147 = por %p145, %p146
      %p148 = scmp.ne.s32.totalorder %s137, %s138
      %p149 = scmp.eq.s32.totalorder %s19, 0
      %p150 = por %p148, %p149
      %p151 = scmp.ne.s32.totalorder %s137, %s138
      %p152 = scmp.eq.s32.totalorder %s20, 3
      %p153 = por %p151, %p152
      %p155 = scmp.ne.s32.totalorder %s138, %s154
      %p156 = scmp.eq.s32.totalorder %s20, 0
      %p157 = por %p155, %p156
      %p158 = scmp.le.s32.totalorder 1, %s14
      %p159 = scmp.lt.s32.totalorder %s14, 5
      %p160 = pnand %p158, %p159
      %p161 = pneg %p160
      // Predicated region
      $region9: #{tpu_custom_call.1} parent=5 // pred_check
        _
      $region10: #{tpu_custom_call.1} parent=5 // pred_check_branch
        %163 = sbr.rel (%p160) target = $region12
      $region11: #{tpu_custom_call.1} parent=5 // pred_region
        %s164 = ssub.s32 %s14, 1
        // Predicated region
        $region13: #{tpu_custom_call.1} parent=11 // pred_check
          %p165 = pneg %p61
        $region14: #{tpu_custom_call.1} parent=11 // pred_check_branch
          %167 = sbr.rel (%p165) target = $region16
        $region15: #{tpu_custom_call.1} parent=11 // pred_region
          _
        $region16: #{tpu_custom_call.1} parent=11 // pred_fallthru
          _
        // Predicated region
        $region17: #{tpu_custom_call.1} parent=11 // pred_check
          %p168 = pneg %p82
        $region18: #{tpu_custom_call.1} parent=11 // pred_check_branch
          %170 = sbr.rel (%p168) target = $region20
        $region19: #{tpu_custom_call.1} parent=11 // pred_region
          _
        $region20: #{tpu_custom_call.1} parent=11 // pred_fallthru
          _
        // Predicated region
        $region21: #{tpu_custom_call.1} parent=11 // pred_check
          %p171 = pneg %p103
        $region22: #{tpu_custom_call.1} parent=11 // pred_check_branch
          %173 = sbr.rel (%p171) target = $region24
        $region23: #{tpu_custom_call.1} parent=11 // pred_region
          _
        $region24: #{tpu_custom_call.1} parent=11 // pred_fallthru
          _
        // Predicated region
        $region25: #{tpu_custom_call.1} parent=11 // pred_check
          %p174 = pneg %p124
        $region26: #{tpu_custom_call.1} parent=11 // pred_check_branch
          %176 = sbr.rel (%p174) target = $region28
        $region27: #{tpu_custom_call.1} parent=11 // pred_region
          _
        $region28: #{tpu_custom_call.1} parent=11 // pred_fallthru
          _
      $region12: #{tpu_custom_call.1} parent=5 // pred_fallthru
        _
      %p177 = scmp.lt.s32.totalorder %s14, 4
      // Predicated region
      $region29: #{tpu_custom_call.1} parent=5 // pred_check
        %p178 = pneg %p177
      $region30: #{tpu_custom_call.1} parent=5 // pred_check_branch
        %180 = sbr.rel (%p178) target = $region32
      $region31: #{tpu_custom_call.1} parent=5 // pred_region
        // Predicated region
        $region33: #{tpu_custom_call.1} parent=31 // pred_check
          %p181 = pneg %p34
        $region34: #{tpu_custom_call.1} parent=31 // pred_check_branch
          %183 = sbr.rel (%p181) target = $region36
        $region35: #{tpu_custom_call.1} parent=31 // pred_region
          %s184 = sand.u32 %s24, 1
          %s185 = scalar_lea.sflag [#allocation3], %s184
          %s186 = sand.u32 %s24, 1
          %s187 = smul.addr %s186, 160
          %s188 = scalar_lea.vmem [#allocation2], %s187
          %s189 = smul.u32 4, %s14
          %s190 = ssub.s32 13, %s189
          %p191 = scmp.lt.s32.totalorder %s190, 4
          %s192 = scalar_select %p191, %s190, 4
          %s193 = smul.u32 128, %s192
          %s194 = smul.u32 %s193, 5
          %s196 = ssub.s32 2560, %s194
          %197 = vsyncadd %s185, %s196
          %p198 = scmp.ne.s32.totalorder 0, %s194
          %s199 = smul.addr %s189, 5
          %s200 = smul.addr %s199, 128
          %s201 = scalar_lea.hbm %s0, %s200
          %s202 = smul.u32 40, %s192
          %s203 = sshll.u32 %s188, 4
          %s204 = int_to_ptr.vmem [resolvable:$true] %s203
          %s205 = sshll.u32 %s202, 4
          %209 = dma.hbm_to_vmem [thread:$0]  (%p198), %s201, %s205, %s204, %s185, 640, 640, 40
        $region36: #{tpu_custom_call.1} parent=31 // pred_fallthru
          _
      $region32: #{tpu_custom_call.1} parent=5 // pred_fallthru
        _
      %p210 = scmp.le.s32.totalorder 1, %s14
      %p211 = scmp.lt.s32.totalorder %s14, 5
      %p212 = pnand %p210, %p211
      %p213 = pneg %p212
      // Predicated region
      $region37: #{tpu_custom_call.1} parent=5 // pred_check
        _
      $region38: #{tpu_custom_call.1} parent=5 // pred_check_branch
        %215 = sbr.rel (%p212) target = $region40
      $region39: #{tpu_custom_call.1} parent=5 // pred_region
        %s216 = ssub.s32 %s14, 1
        %s217 = sand.u32 %s27, 1
        %s218 = scalar_lea.sflag [#allocation3], %s217
        %s219 = sand.u32 %s27, 1
        %s220 = smul.addr %s219, 160
        %s221 = scalar_lea.vmem [#allocation2], %s220
        // Predicated region
        $region41: #{tpu_custom_call.1} parent=39 // pred_check
          %p222 = pneg %p40
        $region42: #{tpu_custom_call.1} parent=39 // pred_check_branch
          %224 = sbr.rel (%p222) target = $region44
        $region43: #{tpu_custom_call.1} parent=39 // pred_region
          %225 = dma.done %s218, 2560
        $region44: #{tpu_custom_call.1} parent=39 // pred_fallthru
          _
        %s226 = sand.u32 %s27, 1
        %s227 = scalar_lea.sflag [#allocation3], %s226
        %s228 = sand.u32 %s27, 1
        %s229 = smul.addr %s228, 160
        %s230 = scalar_lea.vmem [#allocation2], %s229
        %p231 = pneg %p40
        %p232 = pneg %p37
        %p233 = pneg %p61
        %p234 = pneg %p58
        %p235 = pneg %p82
        %p236 = pneg %p79
        %p237 = pneg %p103
        %p238 = pneg %p100
        %p239 = pneg %p124
        %p240 = pneg %p121
        %p241 = pneg %p150
        %p242 = pneg %p147
        %s243 = sand.u32 %s137, 1
        %s244 = sand.u32 %s137, 1
        %s245 = smul.addr %s244, 32
        %s246 = scalar_lea.vmem [#allocation4], %s245
        %s247 = smul.u32 4, %s19
        %s248 = ssub.s32 13, %s247
        %p249 = scmp.lt.s32.totalorder %s248, 4
        %s250 = scalar_select %p249, %s248, 4
        %s251 = smul.u32 128, %s250
        %s252 = smul.u32 %s251, 5
        %s253 = smul.u32 4, %s19
        %s254 = ssub.s32 13, %s253
        %p255 = scmp.lt.s32.totalorder %s254, 4
        %s256 = scalar_select %p255, %s254, 4
        %s257 = smul.u32 128, %s256
        %v259 = vld [vmem:[%s221] sm:$0xff]
        %v260 = vld [vmem:[%s221 + $0x8] sm:$0xff]
        %v261 = vld [vmem:[%s221 + $0x10] sm:$0xff]
        %v262 = vld [vmem:[%s221 + $0x18] sm:$0xff]
        %v263 = vld [vmem:[%s221 + $0x20] sm:$0xff]
        %v264 = vld [vmem:[%s221 + $0x28] sm:$0xff]
        %v265 = vld [vmem:[%s221 + $0x30] sm:$0xff]
        %v266 = vld [vmem:[%s221 + $0x38] sm:$0xff]
        %v267 = vld [vmem:[%s221 + $0x40] sm:$0xff]
        %v268 = vld [vmem:[%s221 + $0x48] sm:$0xff]
        %v269 = vld [vmem:[%s221 + $0x50] sm:$0xff]
        %v270 = vld [vmem:[%s221 + $0x58] sm:$0xff]
        %v271 = vld [vmem:[%s221 + $0x60] sm:$0xff]
        %v272 = vld [vmem:[%s221 + $0x68] sm:$0xff]
        %v273 = vld [vmem:[%s221 + $0x70] sm:$0xff]
        %v274 = vld [vmem:[%s221 + $0x78] sm:$0xff]
        %v275 = vld [vmem:[%s221 + $0x80] sm:$0xff]
        %v276 = vld [vmem:[%s221 + $0x88] sm:$0xff]
        %v277 = vld [vmem:[%s221 + $0x90] sm:$0xff]
        %v278 = vld [vmem:[%s221 + $0x98] sm:$0xff]
        %v279 = vpack.c.bf16 %v264, %v259
        %v280 = vpack.c.bf16 %v265, %v260
        %v281 = vpack.c.bf16 %v266, %v261
        %v282 = vpack.c.bf16 %v267, %v262
        %v283 = vpack.c.bf16 %v268, %v263
        %v284 = vpack.c.bf16 %v274, %v269
        %v285 = vpack.c.bf16 %v275, %v270
        %v286 = vpack.c.bf16 %v276, %v271
        %v287 = vpack.c.bf16 %v277, %v272
        %v288 = vpack.c.bf16 %v278, %v273
        %v289 = vld [vmem:[%s1] sm:$0xf]
        %v290 = vld [vmem:[%s1 + $0x4] sm:$0xf]
        %v291 = vld [vmem:[%s1 + $0x8] sm:$0xf]
        %v292 = vld [vmem:[%s1 + $0xc] sm:$0xf]
        %v293 = vld [vmem:[%s1 + $0x10] sm:$0xf]
        %v294 = vld [vmem:[%s1 + $0x14] sm:$0xf]
        %v295 = vld [vmem:[%s1 + $0x18] sm:$0xf]
        %v296 = vld [vmem:[%s1 + $0x1c] sm:$0xf]
        %v297 = vld [vmem:[%s1 + $0x20] sm:$0xf]
        %v298 = vld [vmem:[%s1 + $0x24] sm:$0xf]
        %v299 = vld [vmem:[%s1 + $0x28] sm:$0xf]
        %v300 = vld [vmem:[%s1 + $0x2c] sm:$0xf]
        %v301 = vld [vmem:[%s1 + $0x30] sm:$0xf]
        %v302 = vld [vmem:[%s1 + $0x34] sm:$0xf]
        %v303 = vld [vmem:[%s1 + $0x38] sm:$0xf]
        %v304 = vld [vmem:[%s1 + $0x3c] sm:$0xf]
        %v305 = vld [vmem:[%s1 + $0x40] sm:$0xf]
        %v306 = vld [vmem:[%s1 + $0x44] sm:$0xf]
        %v307 = vld [vmem:[%s1 + $0x48] sm:$0xf]
        %v308 = vld [vmem:[%s1 + $0x4c] sm:$0xf]
        %v309 = vld [vmem:[%s1 + $0x50] sm:$0xf]
        %v310 = vld [vmem:[%s1 + $0x54] sm:$0xf]
        %v311 = vld [vmem:[%s1 + $0x58] sm:$0xf]
        %v312 = vld [vmem:[%s1 + $0x5c] sm:$0xf]
        %v313 = vld [vmem:[%s1 + $0x60] sm:$0xf]
        %v314 = vld [vmem:[%s1 + $0x64] sm:$0xf]
        %v315 = vld [vmem:[%s1 + $0x68] sm:$0xf]
        %v316 = vld [vmem:[%s1 + $0x6c] sm:$0xf]
        %v317 = vld [vmem:[%s1 + $0x70] sm:$0xf]
        %v318 = vld [vmem:[%s1 + $0x74] sm:$0xf]
        %v319 = vld [vmem:[%s1 + $0x78] sm:$0xf]
        %v320 = vld [vmem:[%s1 + $0x7c] sm:$0xf]
        %v321 = vld [vmem:[%s1 + $0x80] sm:$0xf]
        %v322 = vld [vmem:[%s1 + $0x84] sm:$0xf]
        %v323 = vld [vmem:[%s1 + $0x88] sm:$0xf]
        %v324 = vld [vmem:[%s1 + $0x8c] sm:$0xf]
        %v325 = vld [vmem:[%s1 + $0x90] sm:$0xf]
        %v326 = vld [vmem:[%s1 + $0x94] sm:$0xf]
        %v327 = vld [vmem:[%s1 + $0x98] sm:$0xf]
        %v328 = vld [vmem:[%s1 + $0x9c] sm:$0xf]
        %v329 = vld [vmem:[%s1 + $0xa0] sm:$0xf]
        %v330 = vld [vmem:[%s1 + $0xa4] sm:$0xf]
        %v331 = vld [vmem:[%s1 + $0xa8] sm:$0xf]
        %v332 = vld [vmem:[%s1 + $0xac] sm:$0xf]
        %v333 = vld [vmem:[%s1 + $0xb0] sm:$0xf]
        %v334 = vld [vmem:[%s1 + $0xb4] sm:$0xf]
        %v335 = vld [vmem:[%s1 + $0xb8] sm:$0xf]
        %v336 = vld [vmem:[%s1 + $0xbc] sm:$0xf]
        %v337 = vld [vmem:[%s1 + $0xc0] sm:$0xf]
        %v338 = vld [vmem:[%s1 + $0xc4] sm:$0xf]
        %v339 = vld [vmem:[%s1 + $0xc8] sm:$0xf]
        %v340 = vld [vmem:[%s1 + $0xcc] sm:$0xf]
        %v341 = vld [vmem:[%s1 + $0xd0] sm:$0xf]
        %v342 = vld [vmem:[%s1 + $0xd4] sm:$0xf]
        %v343 = vld [vmem:[%s1 + $0xd8] sm:$0xf]
        %v344 = vld [vmem:[%s1 + $0xdc] sm:$0xf]
        %v345 = vld [vmem:[%s1 + $0xe0] sm:$0xf]
        %v346 = vld [vmem:[%s1 + $0xe4] sm:$0xf]
        %v347 = vld [vmem:[%s1 + $0xe8] sm:$0xf]
        %v348 = vld [vmem:[%s1 + $0xec] sm:$0xf]
        %v349 = vld [vmem:[%s1 + $0xf0] sm:$0xf]
        %v350 = vld [vmem:[%s1 + $0xf4] sm:$0xf]
        %v351 = vld [vmem:[%s1 + $0xf8] sm:$0xf]
        %v352 = vld [vmem:[%s1 + $0xfc] sm:$0xf]
        %v353 = vld [vmem:[%s1 + $0x100] sm:$0xf]
        %v354 = vld [vmem:[%s1 + $0x104] sm:$0xf]
        %v355 = vld [vmem:[%s1 + $0x108] sm:$0xf]
        %v356 = vld [vmem:[%s1 + $0x10c] sm:$0xf]
        %v357 = vld [vmem:[%s1 + $0x110] sm:$0xf]
        %v358 = vld [vmem:[%s1 + $0x114] sm:$0xf]
        %v359 = vld [vmem:[%s1 + $0x118] sm:$0x1]
        %v360 = vld [vmem:[%s2] sm:$0x1]
        %v362 = vlaneseq
        %v363 = vshrl.u32 %v362, 7
        %v364 = vsub.s32 0, %v363
        %v365 = vrot.slane %v360, %v364
        %v438 = vunpack.c.l.b16 %v289
        %v439 = vunpack.c.l.b16 %v290
        %v440 = vunpack.c.l.b16 %v291
        %v441 = vunpack.c.l.b16 %v292
        %v442 = vunpack.c.l.b16 %v293
        %v443 = vunpack.c.l.b16 %v294
        %v444 = vunpack.c.l.b16 %v295
        %v445 = vunpack.c.l.b16 %v296
        %v446 = vunpack.c.l.b16 %v297
        %v447 = vunpack.c.l.b16 %v298
        %v448 = vunpack.c.l.b16 %v299
        %v449 = vunpack.c.l.b16 %v300
        %v450 = vunpack.c.l.b16 %v301
        %v451 = vunpack.c.l.b16 %v302
        %v452 = vunpack.c.l.b16 %v303
        %v453 = vunpack.c.l.b16 %v304
        %v454 = vunpack.c.l.b16 %v305
        %v455 = vunpack.c.l.b16 %v306
        %v456 = vunpack.c.l.b16 %v307
        %v457 = vunpack.c.l.b16 %v308
        %v458 = vunpack.c.l.b16 %v309
        %v459 = vunpack.c.l.b16 %v310
        %v460 = vunpack.c.l.b16 %v311
        %v461 = vunpack.c.l.b16 %v312
        %v462 = vunpack.c.l.b16 %v313
        %v463 = vunpack.c.l.b16 %v314
        %v464 = vunpack.c.l.b16 %v315
        %v465 = vunpack.c.l.b16 %v316
        %v466 = vunpack.c.l.b16 %v317
        %v467 = vunpack.c.l.b16 %v318
        %v468 = vunpack.c.l.b16 %v319
        %v469 = vunpack.c.l.b16 %v320
        %v470 = vunpack.c.l.b16 %v321
        %v471 = vunpack.c.l.b16 %v322
        %v472 = vunpack.c.l.b16 %v323
        %v473 = vunpack.c.l.b16 %v324
        %v474 = vunpack.c.l.b16 %v325
        %v475 = vunpack.c.l.b16 %v326
        %v476 = vunpack.c.l.b16 %v327
        %v477 = vunpack.c.l.b16 %v328
        %v478 = vunpack.c.l.b16 %v329
        %v479 = vunpack.c.l.b16 %v330
        %v480 = vunpack.c.l.b16 %v331
        %v481 = vunpack.c.l.b16 %v332
        %v482 = vunpack.c.l.b16 %v333
        %v483 = vunpack.c.l.b16 %v334
        %v484 = vunpack.c.l.b16 %v335
        %v485 = vunpack.c.l.b16 %v336
        %v486 = vunpack.c.l.b16 %v337
        %v487 = vunpack.c.l.b16 %v338
        %v488 = vunpack.c.l.b16 %v339
        %v489 = vunpack.c.l.b16 %v340
        %v490 = vunpack.c.l.b16 %v341
        %v491 = vunpack.c.l.b16 %v342
        %v492 = vunpack.c.l.b16 %v343
        %v493 = vunpack.c.l.b16 %v344
        %v494 = vunpack.c.l.b16 %v345
        %v495 = vunpack.c.l.b16 %v346
        %v496 = vunpack.c.l.b16 %v347
        %v497 = vunpack.c.l.b16 %v348
        %v498 = vunpack.c.l.b16 %v349
        %v499 = vunpack.c.l.b16 %v350
        %v500 = vunpack.c.l.b16 %v351
        %v501 = vunpack.c.l.b16 %v352
        %v502 = vunpack.c.l.b16 %v353
        %v503 = vunpack.c.l.b16 %v354
        %v504 = vunpack.c.l.b16 %v355
        %v505 = vunpack.c.l.b16 %v356
        %v506 = vunpack.c.l.b16 %v357
        %v507 = vunpack.c.l.b16 %v358
        %v508 = vunpack.c.l.b16 %v359
        %v509 = vpack.c.b16 %v439, %v438
        %v510 = vpack.c.b16 %v441, %v440
        %v511 = vpack.c.b16 %v443, %v442
        %v512 = vpack.c.b16 %v445, %v444
        %v513 = vpack.c.b16 %v447, %v446
        %v514 = vpack.c.b16 %v449, %v448
        %v515 = vpack.c.b16 %v451, %v450
        %v516 = vpack.c.b16 %v453, %v452
        %v517 = vpack.c.b16 %v455, %v454
        %v518 = vpack.c.b16 %v457, %v456
        %v519 = vpack.c.b16 %v459, %v458
        %v520 = vpack.c.b16 %v461, %v460
        %v521 = vpack.c.b16 %v463, %v462
        %v522 = vpack.c.b16 %v465, %v464
        %v523 = vpack.c.b16 %v467, %v466
        %v524 = vpack.c.b16 %v469, %v468
        %v525 = vpack.c.b16 %v471, %v470
        %v526 = vpack.c.b16 %v473, %v472
        %v527 = vpack.c.b16 %v475, %v474
        %v528 = vpack.c.b16 %v477, %v476
        %v529 = vpack.c.b16 %v479, %v478
        %v530 = vpack.c.b16 %v481, %v480
        %v531 = vpack.c.b16 %v483, %v482
        %v532 = vpack.c.b16 %v485, %v484
        %v533 = vpack.c.b16 %v487, %v486
        %v534 = vpack.c.b16 %v489, %v488
        %v535 = vpack.c.b16 %v491, %v490
        %v536 = vpack.c.b16 %v493, %v492
        %v537 = vpack.c.b16 %v495, %v494
        %v538 = vpack.c.b16 %v497, %v496
        %v539 = vpack.c.b16 %v499, %v498
        %v540 = vpack.c.b16 %v501, %v500
        %v541 = vpack.c.b16 %v503, %v502
        %v542 = vpack.c.b16 %v505, %v504
        %v543 = vpack.c.b16 %v507, %v506
        %v544 = vpack.c.b16 %v508, %v508
        %vm580 = vcmask 400384
        %v582 = vsel %vm580, %v283, 0
        %v585 = vsel %vm580, %v288, 0
        %vm587 = vcmask 1040384
        %v588 = vsel 0, 4294967295, 65535
        %v589 = vsel %vm587, %v588, 0
        %v591 = vand.u32 %v544, %v589
        %593 = vmatprep.subr.bf16.mxu0 0
        %594 = vmatpush1.bf16.msra.mxu0 %v509
        %595 = vmatprep.subr.bf16.mxu0 0
        %596 = vmatpush1.bf16.msra.mxu0 %v510
        %597 = vmatprep.subr.bf16.mxu0 0
        %598 = vmatpush1.bf16.msra.mxu0 %v511
        %599 = vmatprep.subr.bf16.mxu0 0
        %600 = vmatpush1.bf16.msra.mxu0 %v512
        %601 = vmatprep.subr.bf16.mxu0 0
        %602 = vmatpush1.bf16.msra.mxu0 %v513
        %603 = vmatprep.subr.bf16.mxu0 0
        %604 = vmatpush1.bf16.msra.mxu0 %v514
        %605 = vmatprep.subr.bf16.mxu0 0
        %606 = vmatpush1.bf16.msra.mxu0 %v515
        %607 = vmatprep.subr.bf16.mxu0 0
        %608 = vmatpush1.bf16.msra.mxu0 %v516
        %609 = vmatprep.subr.bf16.mxu0 0
        %610 = vmatpush1.bf16.msra.mxu0 %v517
        %611 = vmatprep.subr.bf16.mxu0 0
        %612 = vmatpush1.bf16.msra.mxu0 %v518
        %613 = vmatprep.subr.bf16.mxu0 0
        %614 = vmatpush1.bf16.msra.mxu0 %v519
        %615 = vmatprep.subr.bf16.mxu0 0
        %616 = vmatpush1.bf16.msra.mxu0 %v520
        %617 = vmatprep.subr.bf16.mxu0 0
        %618 = vmatpush1.bf16.msra.mxu0 %v521
        %619 = vmatprep.subr.bf16.mxu0 0
        %620 = vmatpush1.bf16.msra.mxu0 %v522
        %621 = vmatprep.subr.bf16.mxu0 0
        %622 = vmatpush1.bf16.msra.mxu0 %v523
        %623 = vmatprep.subr.bf16.mxu0 0
        %624 = vmatpush1.bf16.msra.mxu0 %v524
        %625 = vmatprep.mubr.bf16.mxu0 %v280
        %626 = vmatmul.mubr.bf16.gmra.mrb[0].mxu0 %v279
        %v627 = vpop.f32.mrb[0].mxu0
        %v628 = vadd.f32 %v365, %v627
        %v629 = vpop.f32.mrb[0].mxu0
        %v630 = vpop.f32.mrb[0].mxu0
        %v631 = vadd.f32 %v365, %v630
        %v632 = vpop.f32.mrb[0].mxu0
        %633 = vmatprep.mubr.bf16.mxu0 %v285
        %634 = vmatmul.mubr.bf16.gmra.mrb[0].mxu0 %v284
        %v635 = vpop.f32.mrb[0].mxu0
        %v636 = vadd.f32 %v365, %v635
        %v637 = vpop.f32.mrb[0].mxu0
        %v638 = vpop.f32.mrb[0].mxu0
        %v639 = vadd.f32 %v365, %v638
        %v640 = vpop.f32.mrb[0].mxu0
        %641 = vdwg.mxu0
        %642 = vmatprep.subr.bf16.mxu0 0
        %643 = vmatpush1.bf16.msra.mxu0 %v525
        %644 = vmatprep.subr.bf16.mxu0 0
        %645 = vmatpush1.bf16.msra.mxu0 %v526
        %646 = vmatprep.subr.bf16.mxu0 0
        %647 = vmatpush1.bf16.msra.mxu0 %v527
        %648 = vmatprep.subr.bf16.mxu0 0
        %649 = vmatpush1.bf16.msra.mxu0 %v528
        %650 = vmatprep.subr.bf16.mxu0 0
        %651 = vmatpush1.bf16.msra.mxu0 %v529
        %652 = vmatprep.subr.bf16.mxu0 0
        %653 = vmatpush1.bf16.msra.mxu0 %v530
        %654 = vmatprep.subr.bf16.mxu0 0
        %655 = vmatpush1.bf16.msra.mxu0 %v531
        %656 = vmatprep.subr.bf16.mxu0 0
        %657 = vmatpush1.bf16.msra.mxu0 %v532
        %658 = vmatprep.subr.bf16.mxu0 0
        %659 = vmatpush1.bf16.msra.mxu0 %v533
        %660 = vmatprep.subr.bf16.mxu0 0
        %661 = vmatpush1.bf16.msra.mxu0 %v534
        %662 = vmatprep.subr.bf16.mxu0 0
        %663 = vmatpush1.bf16.msra.mxu0 %v535
        %664 = vmatprep.subr.bf16.mxu0 0
        %665 = vmatpush1.bf16.msra.mxu0 %v536
        %666 = vmatprep.subr.bf16.mxu0 0
        %667 = vmatpush1.bf16.msra.mxu0 %v537
        %668 = vmatprep.subr.bf16.mxu0 0
        %669 = vmatpush1.bf16.msra.mxu0 %v538
        %670 = vmatprep.subr.bf16.mxu0 0
        %671 = vmatpush1.bf16.msra.mxu0 %v539
        %672 = vmatprep.subr.bf16.mxu0 0
        %673 = vmatpush1.bf16.msra.mxu0 %v540
        %674 = vmatprep.mubr.bf16.mxu0 %v282
        %675 = vmatmul.mubr.bf16.gmra.mrb[0].mxu0 %v281
        %v676 = vpop.f32.mrb[0].mxu0
        %v677 = vadd.f32 %v628, %v676
        %v678 = vpop.f32.mrb[0].mxu0
        %v679 = vpop.f32.mrb[0].mxu0
        %v680 = vadd.f32 %v631, %v679
        %v681 = vpop.f32.mrb[0].mxu0
        %682 = vmatprep.mubr.bf16.mxu0 %v287
        %683 = vmatmul.mubr.bf16.gmra.mrb[0].mxu0 %v286
        %v684 = vpop.f32.mrb[0].mxu0
        %v685 = vadd.f32 %v636, %v684
        %v686 = vpop.f32.mrb[0].mxu0
        %v687 = vpop.f32.mrb[0].mxu0
        %v688 = vadd.f32 %v639, %v687
        %v689 = vpop.f32.mrb[0].mxu0
        %690 = vdwg.mxu0
        %691 = vmatprep.subr.bf16.mxu0 0
        %692 = vmatpush1.bf16.msra.mxu0 %v541
        %693 = vmatprep.subr.bf16.mxu0 0
        %694 = vmatpush1.bf16.msra.mxu0 %v542
        %695 = vmatprep.subr.bf16.mxu0 0
        %696 = vmatpush1.bf16.msra.mxu0 %v543
        %697 = vmatprep.subr.bf16.mxu0 0
        %698 = vmatpush1.bf16.msra.mxu0 %v591
        %699 = vmatprep.subr.bf16.mxu0 0
        %700 = vmatpush1.bf16.msra.mxu0 0
        %701 = vmatprep.subr.bf16.mxu0 0
        %702 = vmatpush1.bf16.msra.mxu0 0
        %703 = vmatprep.subr.bf16.mxu0 0
        %704 = vmatpush1.bf16.msra.mxu0 0
        %705 = vmatprep.subr.bf16.mxu0 0
        %706 = vmatpush1.bf16.msra.mxu0 0
        %707 = vmatprep.subr.bf16.mxu0 0
        %708 = vmatpush1.bf16.msra.mxu0 0
        %709 = vmatprep.subr.bf16.mxu0 0
        %710 = vmatpush1.bf16.msra.mxu0 0
        %711 = vmatprep.subr.bf16.mxu0 0
        %712 = vmatpush1.bf16.msra.mxu0 0
        %713 = vmatprep.subr.bf16.mxu0 0
        %714 = vmatpush1.bf16.msra.mxu0 0
        %715 = vmatprep.subr.bf16.mxu0 0
        %716 = vmatpush1.bf16.msra.mxu0 0
        %717 = vmatprep.subr.bf16.mxu0 0
        %718 = vmatpush1.bf16.msra.mxu0 0
        %719 = vmatprep.subr.bf16.mxu0 0
        %720 = vmatpush1.bf16.msra.mxu0 0
        %721 = vmatprep.subr.bf16.mxu0 0
        %722 = vmatpush1.bf16.msra.mxu0 0
        %723 = vmatprep.mubr.bf16.mxu0 0
        %724 = vmatmul.mubr.bf16.gmra.mrb[0].mxu0 %v582
        %v725 = vpop.f32.mrb[0].mxu0
        %v726 = vadd.f32 %v677, %v725
        %v727 = vpop.f32.mrb[0].mxu0
        %v728 = vpop.f32.mrb[0].mxu0
        %v729 = vadd.f32 %v680, %v728
        %v730 = vpop.f32.mrb[0].mxu0
        %731 = vmatprep.mubr.bf16.mxu0 0
        %732 = vmatmul.mubr.bf16.gmra.mrb[0].mxu0 %v585
        %v733 = vpop.f32.mrb[0].mxu0
        %v734 = vadd.f32 %v685, %v733
        %v735 = vpop.f32.mrb[0].mxu0
        %v736 = vpop.f32.mrb[0].mxu0
        %v737 = vadd.f32 %v688, %v736
        %v738 = vpop.f32.mrb[0].mxu0
        %739 = vdwg.mxu0
        %v740 = vmax.f32 %v726, 0.0
        %v741 = vmax.f32 %v729, 0.0
        %v742 = vmax.f32 %v734, 0.0
        %v743 = vmax.f32 %v737, 0.0
        %v744 = vld [vmem:[%s3] sm:$0xff]
        %v745 = vld [vmem:[%s3 + $0x8] sm:$0xff]
        %v746 = vld [vmem:[%s3 + $0x10] sm:$0xff]
        %v747 = vld [vmem:[%s3 + $0x18] sm:$0xff]
        %v748 = vld [vmem:[%s3 + $0x20] sm:$0xff]
        %v749 = vld [vmem:[%s3 + $0x28] sm:$0xff]
        %v750 = vld [vmem:[%s3 + $0x30] sm:$0x3]
        %v751 = vld [vmem:[%s4] sm:$0x1]
        %v753 = vlaneseq
        %v754 = vshrl.u32 %v753, 7
        %v755 = vsub.s32 0, %v754
        %v756 = vrot.slane %v751, %v755
        %vm758 = vcmask 408576
        %v760 = vsel %vm758, %v740, 0
        %v763 = vsel %vm758, %v741, 0
        %v766 = vsel %vm758, %v742, 0
        %v769 = vsel %vm758, %v743, 0
        %vm771 = vcmask 1041408
        %v773 = vsel %vm771, %v750, 0
        %775 = vmatprep.subr.mxu0 0.0
        %776 = vmatpush1.msra.mxu0 %v744
        %777 = vmatprep.subr.mxu0 0.0
        %778 = vmatpush1.msra.mxu0 %v745
        %779 = vmatprep.subr.mxu0 0.0
        %780 = vmatpush1.msra.mxu0 %v746
        %781 = vmatprep.subr.mxu0 0.0
        %782 = vmatpush1.msra.mxu0 %v747
        %783 = vmatprep.subr.mxu0 0.0
        %784 = vmatpush1.msra.mxu0 %v748
        %785 = vmatprep.subr.mxu0 0.0
        %786 = vmatpush1.msra.mxu0 %v749
        %787 = vmatprep.subr.mxu0 0.0
        %788 = vmatpush1.msra.mxu0 %v773
        %789 = vmatprep.subr.mxu0 0.0
        %790 = vmatpush1.msra.mxu0 0.0
        %791 = vmatprep.subr.mxu0 0.0
        %792 = vmatpush1.msra.mxu0 0.0
        %793 = vmatprep.subr.mxu0 0.0
        %794 = vmatpush1.msra.mxu0 0.0
        %795 = vmatprep.subr.mxu0 0.0
        %796 = vmatpush1.msra.mxu0 0.0
        %797 = vmatprep.subr.mxu0 0.0
        %798 = vmatpush1.msra.mxu0 0.0
        %799 = vmatprep.subr.mxu0 0.0
        %800 = vmatpush1.msra.mxu0 0.0
        %801 = vmatprep.subr.mxu0 0.0
        %802 = vmatpush1.msra.mxu0 0.0
        %803 = vmatprep.subr.mxu0 0.0
        %804 = vmatpush1.msra.mxu0 0.0
        %805 = vmatprep.subr.mxu0 0.0
        %806 = vmatpush1.msra.mxu0 0.0
        %807 = vmatprep.subr.mxu0 0.0
        %808 = vmatpush1.msra.mxu0 0.0
        %809 = vmatprep.subr.mxu0 0.0
        %810 = vmatpush1.msra.mxu0 0.0
        %811 = vmatprep.subr.mxu0 0.0
        %812 = vmatpush1.msra.mxu0 0.0
        %813 = vmatprep.subr.mxu0 0.0
        %814 = vmatpush1.msra.mxu0 0.0
        %815 = vmatprep.subr.mxu0 0.0
        %816 = vmatpush1.msra.mxu0 0.0
        %817 = vmatprep.subr.mxu0 0.0
        %818 = vmatpush1.msra.mxu0 0.0
        %819 = vmatprep.subr.mxu0 0.0
        %820 = vmatpush1.msra.mxu0 0.0
        %821 = vmatprep.subr.mxu0 0.0
        %822 = vmatpush1.msra.mxu0 0.0
        %823 = vmatprep.subr.mxu0 0.0
        %824 = vmatpush1.msra.mxu0 0.0
        %825 = vmatprep.subr.mxu0 0.0
        %826 = vmatpush1.msra.mxu0 0.0
        %827 = vmatprep.subr.mxu0 0.0
        %828 = vmatpush1.msra.mxu0 0.0
        %829 = vmatprep.subr.mxu0 0.0
        %830 = vmatpush1.msra.mxu0 0.0
        %831 = vmatprep.subr.mxu0 0.0
        %832 = vmatpush1.msra.mxu0 0.0
        %833 = vmatprep.subr.mxu0 0.0
        %834 = vmatpush1.msra.mxu0 0.0
        %835 = vmatprep.subr.mxu0 0.0
        %836 = vmatpush1.msra.mxu0 0.0
        %837 = vmatprep.subr.mxu0 0.0
        %838 = vmatpush1.msra.mxu0 0.0
        %839 = vmatprep.mubr.f32.mxu0 0.0
        %840 = vmatmul.mubr.f32.gmra.mrb[0].mxu0 %v760
        %v841 = vpop.f32.mrb[0].mxu0
        %v842 = vadd.f32 %v756, %v841
        %v843 = vpop.f32.mrb[0].mxu0
        %844 = vmatprep.mubr.f32.mxu0 0.0
        %845 = vmatmul.mubr.f32.gmra.mrb[0].mxu0 %v763
        %v846 = vpop.f32.mrb[0].mxu0
        %v847 = vadd.f32 %v756, %v846
        %v848 = vpop.f32.mrb[0].mxu0
        %849 = vmatprep.mubr.f32.mxu0 0.0
        %850 = vmatmul.mubr.f32.gmra.mrb[0].mxu0 %v766
        %v851 = vpop.f32.mrb[0].mxu0
        %v852 = vadd.f32 %v756, %v851
        %v853 = vpop.f32.mrb[0].mxu0
        %854 = vmatprep.mubr.f32.mxu0 0.0
        %855 = vmatmul.mubr.f32.gmra.mrb[0].mxu0 %v769
        %v856 = vpop.f32.mrb[0].mxu0
        %v857 = vadd.f32 %v756, %v856
        %v858 = vpop.f32.mrb[0].mxu0
        %859 = vdwg.mxu0
        %vm860 = vcmask 48128
        %v861 = vsel %vm860, %v842, -inf
        %862 = vmax.xlane.f32.xlu0 %v861
        %v863 = vpop.xlane.xlu0 %862
        %v864 = vsel %vm860, %v847, -inf
        %865 = vmax.xlane.f32.xlu0 %v864
        %v866 = vpop.xlane.xlu0 %865
        %v867 = vsel %vm860, %v852, -inf
        %868 = vmax.xlane.f32.xlu0 %v867
        %v869 = vpop.xlane.xlu0 %868
        %v870 = vsel %vm860, %v857, -inf
        %871 = vmax.xlane.f32.xlu0 %v870
        %v872 = vpop.xlane.xlu0 %871
        %v873 = vsub.f32 %v842, %v863
        %v874 = vsub.f32 %v847, %v866
        %v875 = vsub.f32 %v852, %v869
        %v876 = vsub.f32 %v857, %v872
        %v877 = vmul.f32 %v873, 1.442695
        %v878 = vpow.pop %v877
        %v879 = vmul.f32 %v874, 1.442695
        %v880 = vpow.pop %v879
        %v881 = vmul.f32 %v875, 1.442695
        %v882 = vpow.pop %v881
        %v883 = vmul.f32 %v876, 1.442695
        %v884 = vpow.pop %v883
        %v885 = vsel %vm860, %v878, 0.0
        %886 = vadd.xlane.f32.xlu0 %v885
        %v887 = vpop.xlane.xlu0 %886
        %v888 = vsel %vm860, %v880, 0.0
        %889 = vadd.xlane.f32.xlu0 %v888
        %v890 = vpop.xlane.xlu0 %889
        %v891 = vsel %vm860, %v882, 0.0
        %892 = vadd.xlane.f32.xlu0 %v891
        %v893 = vpop.xlane.xlu0 %892
        %v894 = vsel %vm860, %v884, 0.0
        %895 = vadd.xlane.f32.xlu0 %v894
        %v896 = vpop.xlane.xlu0 %895
        %v897 = vlog2.pop %v887
        %v898 = vmul.f32 %v897, 0.6931472
        %v899 = vlog2.pop %v890
        %v900 = vmul.f32 %v899, 0.6931472
        %v901 = vlog2.pop %v893
        %v902 = vmul.f32 %v901, 0.6931472
        %v903 = vlog2.pop %v896
        %v904 = vmul.f32 %v903, 0.6931472
        %v905 = vsub.f32 %v873, %v898
        %v906 = vsub.f32 %v874, %v900
        %v907 = vsub.f32 %v875, %v902
        %v908 = vsub.f32 %v876, %v904
        %909 = vst.msk [vmem:[%s246] sm:$0xff] %vm860, %v905
        %910 = vst.msk [vmem:[%s246 + $0x8] sm:$0xff] %vm860, %v906
        %911 = vst.msk [vmem:[%s246 + $0x10] sm:$0xff] %vm860, %v907
        %912 = vst.msk [vmem:[%s246 + $0x18] sm:$0xff] %vm860, %v908
        %s913 = sand.u32 %s137, 1
        %s914 = sand.u32 %s137, 1
        %s915 = smul.addr %s914, 32
        %s916 = scalar_lea.vmem [#allocation4], %s915
        // Predicated region
        $region45: #{tpu_custom_call.1} parent=39 // pred_check
          %p917 = pneg %p147
        $region46: #{tpu_custom_call.1} parent=39 // pred_check_branch
          %919 = sbr.rel (%p917) target = $region48
        $region47: #{tpu_custom_call.1} parent=39 // pred_region
          %s920 = smul.u32 4, %s19
          %s921 = ssub.s32 13, %s920
          %p922 = scmp.lt.s32.totalorder %s921, 4
          %s923 = scalar_select %p922, %s921, 4
          %s924 = smul.u32 128, %s923
          %p925 = scmp.ne.s32.totalorder 0, %s924
          %s926 = smul.addr %s920, 8
          %s927 = scalar_lea.vmem %s5, %s926
          // Predicated region
          $region49: #{tpu_custom_call.1} parent=47 // pred_check
            %p928 = pneg %p925
          $region50: #{tpu_custom_call.1} parent=47 // pred_check_branch
            %930 = sbr.rel (%p928) target = $region52
          $region51: #{tpu_custom_call.1} parent=47 // pred_region
            // Predicated region
            $region53: #{tpu_custom_call.1} parent=51 // pred_check
              _
            $region54: #{tpu_custom_call.1} parent=51 // pred_check_branch
              %932 = sbr.rel (0) target = $region56
            $region55: #{tpu_custom_call.1} parent=51 // pred_region
              // Predicated region
              $region75: #{tpu_custom_call.1} parent=55 // pred_check
                _
              $region76: #{tpu_custom_call.1} parent=55 // pred_check_branch
                %987 = sbr.rel (0) target = $region78
              $region77: #{tpu_custom_call.1} parent=55 // pred_region
                %s988 = sshrl.u32 %s923, 2
                // While loop
                $region79: #{tpu_custom_call.1} parent=77 // loop_pre_header
                  _
                $region80: #{tpu_custom_call.1} parent=77 // loop_header
                  %s990 = sphi 0, %s992
                  %p991 = scmp.ge.s32.totalorder %s990, %s988
                  %s995 = sphi 0, %s1008
                  %s996 = sphi %s916, %s1011
                  %s997 = sphi %s927, %s1012
                $region81: #{tpu_custom_call.1} parent=77 // loop_header_branch
                  %994 = sbr.rel (%p991) target = $region85
                $region82: #{tpu_custom_call.1} parent=77 // loop_body
                  %v998 = vld [vmem:[%s996] sm:$0xff]
                  %999 = vst [vmem:[%s997] sm:$0xff] %v998
                  %v1000 = vld [vmem:[%s996 + $0x8] sm:$0xff]
                  %1001 = vst [vmem:[%s997 + $0x8] sm:$0xff] %v1000
                  %v1002 = vld [vmem:[%s996 + $0x10] sm:$0xff]
                  %1003 = vst [vmem:[%s997 + $0x10] sm:$0xff] %v1002
                  %v1004 = vld [vmem:[%s996 + $0x18] sm:$0xff]
                  %1005 = vst [vmem:[%s997 + $0x18] sm:$0xff] %v1004
                  %s1006 = sadd.s32 1, %s995
                  %p1007 = scmp.ge.s32.totalorder %s1006, %s988
                  %s1008 = scalar_select %p1007, 0, %s1006
                  %s1009 = smul.u32 %s1008, 32
                  %s1010 = smul.u32 %s1008, 32
                  %s1011 = scalar_lea.vmem %s916, %s1009 [#allocation4]
                  %s1012 = scalar_lea.vmem %s927, %s1010
                $region83: #{tpu_custom_call.1} parent=77 // loop_footer
                  %s992 = sadd.s32 %s990, 1
                $region84: #{tpu_custom_call.1} parent=77 // loop_footer_branch
                  %989 = sbr.rel target = $region80
                $region85: #{tpu_custom_call.1} parent=77 // loop_exit
                  _
                %s1013 = sshrl.u32 %s923, 2
                %s1014 = sand.u32 %s923, 3
                %s1015 = smul.u32 %s1013, 4
                %s1016 = smul.u32 8, %s1015
                %s1017 = scalar_lea.vmem %s916, %s1016 [#allocation4]
                %s1018 = smul.u32 8, %s1015
                %s1019 = scalar_lea.vmem %s927, %s1018
                // While loop
                $region86: #{tpu_custom_call.1} parent=77 // loop_pre_header
                  _
                $region87: #{tpu_custom_call.1} parent=77 // loop_header
                  %s1021 = sphi 0, %s1023
                  %p1022 = scmp.ge.s32.totalorder %s1021, %s1014
                  %s1026 = sphi 0, %s1033
                  %s1027 = sphi %s1017, %s1036
                  %s1028 = sphi %s1019, %s1037
                $region88: #{tpu_custom_call.1} parent=77 // loop_header_branch
                  %1025 = sbr.rel (%p1022) target = $region92
                $region89: #{tpu_custom_call.1} parent=77 // loop_body
                  %v1029 = vld [vmem:[%s1027] sm:$0xff]
                  %1030 = vst [vmem:[%s1028] sm:$0xff] %v1029
                  %s1031 = sadd.s32 1, %s1026
                  %p1032 = scmp.ge.s32.totalorder %s1031, %s1014
                  %s1033 = scalar_select %p1032, 0, %s1031
                  %s1034 = smul.u32 %s1033, 8
                  %s1035 = smul.u32 %s1033, 8
                  %s1036 = scalar_lea.vmem %s1017, %s1034 [#allocation4]
                  %s1037 = scalar_lea.vmem %s1019, %s1035
                $region90: #{tpu_custom_call.1} parent=77 // loop_footer
                  %s1023 = sadd.s32 %s1021, 1
                $region91: #{tpu_custom_call.1} parent=77 // loop_footer_branch
                  %1020 = sbr.rel target = $region87
                $region92: #{tpu_custom_call.1} parent=77 // loop_exit
                  _
              $region78: #{tpu_custom_call.1} parent=55 // pred_fallthru
                _
              // Predicated region
              $region93: #{tpu_custom_call.1} parent=55 // pred_check
                _
              $region94: #{tpu_custom_call.1} parent=55 // pred_check_branch
                %1039 = sbr.rel target = $region96
              $region95: #{tpu_custom_call.1} parent=55 // pred_region
                _
              $region96: #{tpu_custom_call.1} parent=55 // pred_fallthru
                _
            $region56: #{tpu_custom_call.1} parent=51 // pred_fallthru
              _
            // Predicated region
            $region57: #{tpu_custom_call.1} parent=51 // pred_check
              _
            $region58: #{tpu_custom_call.1} parent=51 // pred_check_branch
              %934 = sbr.rel target = $region60
            $region59: #{tpu_custom_call.1} parent=51 // pred_region
              %s936 = sshrl.u32 %s923, 2
              // While loop
              $region61: #{tpu_custom_call.1} parent=59 // loop_pre_header
                _
              $region62: #{tpu_custom_call.1} parent=59 // loop_header
                %s938 = sphi 0, %s940
                %p939 = scmp.ge.s32.totalorder %s938, %s936
                %s943 = sphi 0, %s956
                %s944 = sphi %s916, %s959
                %s945 = sphi %s927, %s960
              $region63: #{tpu_custom_call.1} parent=59 // loop_header_branch
                %942 = sbr.rel (%p939) target = $region67
              $region64: #{tpu_custom_call.1} parent=59 // loop_body
                %v946 = vld [vmem:[%s944] sm:$0xff]
                %947 = vst [vmem:[%s945] sm:$0xff] %v946
                %v948 = vld [vmem:[%s944 + $0x8] sm:$0xff]
                %949 = vst [vmem:[%s945 + $0x8] sm:$0xff] %v948
                %v950 = vld [vmem:[%s944 + $0x10] sm:$0xff]
                %951 = vst [vmem:[%s945 + $0x10] sm:$0xff] %v950
                %v952 = vld [vmem:[%s944 + $0x18] sm:$0xff]
                %953 = vst [vmem:[%s945 + $0x18] sm:$0xff] %v952
                %s954 = sadd.s32 1, %s943
                %p955 = scmp.ge.s32.totalorder %s954, %s936
                %s956 = scalar_select %p955, 0, %s954
                %s957 = smul.u32 %s956, 32
                %s958 = smul.u32 %s956, 32
                %s959 = scalar_lea.vmem %s916, %s957 [#allocation4]
                %s960 = scalar_lea.vmem %s927, %s958
              $region65: #{tpu_custom_call.1} parent=59 // loop_footer
                %s940 = sadd.s32 %s938, 1
              $region66: #{tpu_custom_call.1} parent=59 // loop_footer_branch
                %937 = sbr.rel target = $region62
              $region67: #{tpu_custom_call.1} parent=59 // loop_exit
                _
              %s961 = sshrl.u32 %s923, 2
              %s962 = sand.u32 %s923, 3
              %s963 = smul.u32 %s961, 4
              %s964 = smul.u32 8, %s963
              %s965 = scalar_lea.vmem %s916, %s964 [#allocation4]
              %s966 = smul.u32 8, %s963
              %s967 = scalar_lea.vmem %s927, %s966
              // While loop
              $region68: #{tpu_custom_call.1} parent=59 // loop_pre_header
                _
              $region69: #{tpu_custom_call.1} parent=59 // loop_header
                %s969 = sphi 0, %s971
                %p970 = scmp.ge.s32.totalorder %s969, %s962
                %s974 = sphi 0, %s981
                %s975 = sphi %s965, %s984
                %s976 = sphi %s967, %s985
              $region70: #{tpu_custom_call.1} parent=59 // loop_header_branch
                %973 = sbr.rel (%p970) target = $region74
              $region71: #{tpu_custom_call.1} parent=59 // loop_body
                %v977 = vld [vmem:[%s975] sm:$0xff]
                %978 = vst [vmem:[%s976] sm:$0xff] %v977
                %s979 = sadd.s32 1, %s974
                %p980 = scmp.ge.s32.totalorder %s979, %s962
                %s981 = scalar_select %p980, 0, %s979
                %s982 = smul.u32 %s981, 8
                %s983 = smul.u32 %s981, 8
                %s984 = scalar_lea.vmem %s965, %s982 [#allocation4]
                %s985 = scalar_lea.vmem %s967, %s983
              $region72: #{tpu_custom_call.1} parent=59 // loop_footer
                %s971 = sadd.s32 %s969, 1
              $region73: #{tpu_custom_call.1} parent=59 // loop_footer_branch
                %968 = sbr.rel target = $region69
              $region74: #{tpu_custom_call.1} parent=59 // loop_exit
                _
            $region60: #{tpu_custom_call.1} parent=51 // pred_fallthru
              _
          $region52: #{tpu_custom_call.1} parent=47 // pred_fallthru
            _
          %1040 = vnop
        $region48: #{tpu_custom_call.1} parent=39 // pred_fallthru
          _
      $region40: #{tpu_custom_call.1} parent=5 // pred_fallthru
        _
      %p1041 = scmp.le.s32.totalorder 2, %s14
      // Predicated region
      $region97: #{tpu_custom_call.1} parent=5 // pred_check
        %p1042 = pneg %p1041
      $region98: #{tpu_custom_call.1} parent=5 // pred_check_branch
        %1044 = sbr.rel (%p1042) target = $region100
      $region99: #{tpu_custom_call.1} parent=5 // pred_region
        %s1045 = ssub.s32 %s14, 2
        // Predicated region
        $region101: #{tpu_custom_call.1} parent=99 // pred_check
          %p1046 = pneg %p153
        $region102: #{tpu_custom_call.1} parent=99 // pred_check_branch
          %1048 = sbr.rel (%p1046) target = $region104
        $region103: #{tpu_custom_call.1} parent=99 // pred_region
          %s1049 = sand.u32 %s138, 1
          %s1050 = sand.u32 %s138, 1
          %s1051 = smul.addr %s1050, 32
          %s1052 = scalar_lea.vmem [#allocation4], %s1051
        $region104: #{tpu_custom_call.1} parent=99 // pred_fallthru
          _
      $region100: #{tpu_custom_call.1} parent=5 // pred_fallthru
        _
    $region6: #{tpu_custom_call.1} parent=1 // loop_footer
      %s18 = sadd.s32 1, %s14
    $region7: #{tpu_custom_call.1} parent=1 // loop_footer_branch
      %13 = sbr.rel target = $region3
    $region8: #{tpu_custom_call.1} parent=1 // loop_exit
      _
    %1053 = vsyncpa [#allocation3], 1
    %s1054 = scalar_lea.sflag [#allocation3], 1
    %1055 = vsyncpa %s1054, 1

</llo_original>
